<compile_context>
chip_gen: v6e
topology: v6e:2x2x1
jax: 0.10.0
libtpu: 0.0.40
codegen_flags: <defaults>
</compile_context>

<pallas_src>
import functools

import numpy as np
import jax
import jax.numpy as jnp
from jax import lax
from jax.experimental import pallas as pl
from jax.experimental.pallas import tpu as pltpu

EPS = 1e-5       # ComplexBatchNorm default eps
_LANE = 128


# ----------------------------- Pallas kernels --------------------------------
def conv_stats_kernel(pt_ref, wb_ref, conv_ref, ssum_ref, ssq_ref, scross_ref,
                      *, cout):
    """Pass 1: fused complex transposed-conv GEMM + lane-resident BN partials.

    pt_ref    : (2*T*Cin, TNP) bf16  [real patches ; imag patches], NP on lanes
    wb_ref    : (2*Cout, 2*T*Cin) bf16 block weights [[wr^T,-wi^T],[wi^T,wr^T]]
    conv_ref  : (2*Cout, TNP) f32    [real ; imag] conv output for this block
    ssum_ref  : (1, 2*Cout, 128) f32 per-block lane-resident channel sums
    ssq_ref   : (1, 2*Cout, 128) f32 per-block lane-resident channel sum-sq
    scross_ref: (1, Cout, 128)   f32 per-block lane-resident sum(r*i)
    """
    # Single fused MXU pass; bf16 multiplies, f32 accumulation.
    conv = jnp.dot(wb_ref[...], pt_ref[...], preferred_element_type=jnp.float32)
    conv_ref[...] = conv

    def lane_fold(x):
        # (rows, TNP) -> (rows, 128) with pure full-width VPU adds; the final
        # 128 -> 1 cross-lane reduction is deferred to the wrapper.
        m = x.shape[1] // _LANE
        acc = x[:, 0:_LANE]
        for j in range(1, m):
            acc = acc + x[:, j * _LANE:(j + 1) * _LANE]
        return acc

    # Zero-padded NP columns produce zero conv columns -> no stat contribution.
    ssum_ref[0] = lane_fold(conv)
    ssq_ref[0] = lane_fold(conv * conv)
    scross_ref[0] = lane_fold(conv[0:cout, :] * conv[cout:, :])


def bn_apply_kernel(tab_ref, conv_ref, y_ref, *, cout, slope):
    """Pass 2: pure read-scale-store whitening + affine + CLeakyReLU.

    tab_ref : (3, 2*Cout, 1) f32 precomputed [A; B; C] so that
              y = A*conv + B*swap(conv) + C   (means already folded into C)
    conv_ref: (2*Cout, TNP) f32 [real ; imag]
    y_ref   : (2*Cout, TNP) f32 [yr ; yi]  (dense 8-sublane store)
    """
    a = tab_ref[0]            # (2*Cout, 1)
    b = tab_ref[1]
    c = tab_ref[2]
    conv = conv_ref[...]
    swapped = jnp.concatenate([conv[cout:, :], conv[0:cout, :]], axis=0)
    y = a * conv + b * swapped + c
    y_ref[...] = jnp.where(y >= 0, y, slope * y)


# ------------------------------ JAX glue --------------------------------------
def pad2d_as(x1, x2):
    dh = x2.shape[2] - x1.shape[2]
    dw = x2.shape[3] - x1.shape[3]
    return jnp.pad(x1, ((0, 0), (0, 0), (0, dh), (0, dw)))


def padded_cat(x1, x2):
    return jnp.concatenate([pad2d_as(x1, x2), x2], axis=1)


def _dilate_pad(x_nchw, stride, pad, K):
    """Zero-dilate by `stride`, pad by K-1-pad: transposed conv == VALID corr."""
    p = K - 1 - pad
    assert p >= 0, "padding > kernel_size - 1 is not supported"
    N, C, H, W = x_nchw.shape
    Hd = (H - 1) * stride + 1
    Wd = (W - 1) * stride + 1
    xd = jnp.zeros((N, C, Hd, Wd), x_nchw.dtype)
    xd = xd.at[:, :, ::stride, ::stride].set(x_nchw)
    return jnp.pad(xd, ((0, 0), (0, 0), (p, p), (p, p)))


def _phase_patches(x_d, taps_h, taps_w, a, b, Ho_a, Wo_b, s):
    """Non-zero im2col rows for output phase (a, b).

    x_d: (N, Cin, Hp, Wp) dilated+padded input.
    Returns (len(taps_h)*len(taps_w)*Cin, N*Ho_a*Wo_b) — lane-dense columns.
    """
    N, Cin, _, _ = x_d.shape
    cols = []
    for kh in taps_h:
        h0 = a + kh
        for kw in taps_w:
            w0 = b + kw
            sl = x_d[:, :, h0:h0 + s * (Ho_a - 1) + 1:s,
                           w0:w0 + s * (Wo_b - 1) + 1:s]   # (N,Cin,Ho_a,Wo_b)
            cols.append(jnp.transpose(sl, (1, 0, 2, 3)))   # (Cin,N,Ho_a,Wo_b)
    p = jnp.stack(cols, axis=0)                            # (T,Cin,N,Ho_a,Wo_b)
    return p.reshape(len(taps_h) * len(taps_w) * Cin, N * Ho_a * Wo_b)


def _phase_weight(w, taps_h, taps_w, K):
    """Sub-kernel (flipped) weight columns for one phase: (T*Cin, Cout)."""
    rows = [w[:, :, K - 1 - kh, K - 1 - kw] for kh in taps_h for kw in taps_w]
    wm = jnp.stack(rows, axis=0)              # (T, Cin, Cout)
    return wm.reshape(-1, w.shape[1])


def _pick_tnp(rows_pt, cout, npph, block_np):
    """Lane-block size: as large as requested, clamped to a safe VMEM budget."""
    cap = max(_LANE, (min(block_np, 8192) // _LANE) * _LANE)
    np_ceil = -(-npph // _LANE) * _LANE
    tnp = max(_LANE, min(cap, np_ceil))
    per_col = rows_pt * 2 + (2 * cout) * 4           # bf16 patches + f32 conv
    budget = 12 * 1024 * 1024                        # << 16 MiB v5e default
    while tnp > _LANE and 2 * per_col * tnp > budget:
        tnp = max(_LANE, ((tnp // 2) // _LANE) * _LANE)
    return tnp


def _run_phase_gemm(pt, wb, cout, tnp, nb):
    rows = pt.shape[0]
    NPp = pt.shape[1]
    return pl.pallas_call(
        functools.partial(conv_stats_kernel, cout=cout),
        grid=(nb,),
        in_specs=[pl.BlockSpec((rows, tnp), lambda i: (0, i)),
                  pl.BlockSpec((2 * cout, rows), lambda i: (0, 0))],
        out_specs=(pl.BlockSpec((2 * cout, tnp), lambda i: (0, i)),
                   pl.BlockSpec((1, 2 * cout, _LANE), lambda i: (i, 0, 0)),
                   pl.BlockSpec((1, 2 * cout, _LANE), lambda i: (i, 0, 0)),
                   pl.BlockSpec((1, cout, _LANE), lambda i: (i, 0, 0))),
        out_shape=(jax.ShapeDtypeStruct((2 * cout, NPp), jnp.float32),
                   jax.ShapeDtypeStruct((nb, 2 * cout, _LANE), jnp.float32),
                   jax.ShapeDtypeStruct((nb, 2 * cout, _LANE), jnp.float32),
                   jax.ShapeDtypeStruct((nb, cout, _LANE), jnp.float32)),
        compiler_params=pltpu.CompilerParams(
            dimension_semantics=("parallel",)),
    )(pt, wb)


def _run_phase_bn(tab, conv, cout, tnp, nb, slope):
    NPp = conv.shape[1]
    return pl.pallas_call(
        functools.partial(bn_apply_kernel, cout=cout, slope=slope),
        grid=(nb,),
        in_specs=[pl.BlockSpec((3, 2 * cout, 1), lambda i: (0, 0, 0)),
                  pl.BlockSpec((2 * cout, tnp), lambda i: (0, i))],
        out_specs=pl.BlockSpec((2 * cout, tnp), lambda i: (0, i)),
        out_shape=jax.ShapeDtypeStruct((2 * cout, NPp), jnp.float32),
        compiler_params=pltpu.CompilerParams(
            dimension_semantics=("parallel",)),
    )(tab, conv)


def decoder_forward(params, xr, xi, skip=None, block_np=2048):
    """xr, xi: NCHW float32 (PyTorch convention). Returns NCHW (yr, yi)."""
    if skip is not None:
        xr = padded_cat(xr, skip[0])
        xi = padded_cat(xi, skip[1])

    w_re, w_im = params["w_re"], params["w_im"]        # (Cin, Cout, K, K)
    Cin, Cout, K, _ = w_re.shape
    s, pad = params["stride"], params["pad"]
    P = K - 1 - pad

    N, _, H, W = xr.shape
    Hp = (H - 1) * s + 1 + 2 * P
    Wp = (W - 1) * s + 1 + 2 * P
    Ho, Wo = Hp - K + 1, Wp - K + 1
    NP_total = N * Ho * Wo

    xr_d = _dilate_pad(xr, s, pad, K)                  # (N, Cin, Hp, Wp)
    xi_d = _dilate_pad(xi, s, pad, K)

    # --- sub-pixel phase decomposition: skip structurally-zero taps ----------
    phases = []
    for a in range(s):
        Ho_a = (Ho - a + s - 1) // s if a < Ho else 0
        if Ho_a == 0:
            continue
        taps_h = [kh for kh in range(K) if (a + kh - P) % s == 0]
        for b in range(s):
            Wo_b = (Wo - b + s - 1) // s if b < Wo else 0
            if Wo_b == 0:
                continue
            taps_w = [kw for kw in range(K) if (b + kw - P) % s == 0]
            phases.append((a, b, Ho_a, Wo_b, taps_h, taps_w))

    tot_sum = jnp.zeros((2 * Cout,), jnp.float32)
    tot_sq = jnp.zeros((2 * Cout,), jnp.float32)
    tot_cross = jnp.zeros((Cout,), jnp.float32)
    phase_conv = []

    # ---- pass 1 (per phase): fused complex GEMM + partial BN statistics -----
    for (a, b, Ho_a, Wo_b, taps_h, taps_w) in phases:
        NPph = N * Ho_a * Wo_b
        rows_pt = 2 * len(taps_h) * len(taps_w) * Cin
        tnp = _pick_tnp(rows_pt, Cout, NPph, block_np)
        NPp = -(-NPph // tnp) * tnp
        nb = NPp // tnp

        if not taps_h or not taps_w:                   # possible when s > K
            conv = jnp.zeros((2 * Cout, NPp), jnp.float32)
            phase_conv.append((a, b, Ho_a, Wo_b, NPph, tnp, nb, conv))
            continue

        pr = _phase_patches(xr_d, taps_h, taps_w, a, b, Ho_a, Wo_b, s)
        pi = _phase_patches(xi_d, taps_h, taps_w, a, b, Ho_a, Wo_b, s)
        pt = jnp.concatenate([pr, pi], axis=0).astype(jnp.bfloat16)
        pt = jnp.pad(pt, ((0, 0), (0, NPp - NPph)))    # (rows_pt, NPp) bf16

        wr_c = _phase_weight(w_re, taps_h, taps_w, K)  # (T*Cin, Cout)
        wi_c = _phase_weight(w_im, taps_h, taps_w, K)
        wb = jnp.concatenate(
            [jnp.concatenate([wr_c.T, -wi_c.T], axis=1),
             jnp.concatenate([wi_c.T, wr_c.T], axis=1)],
            axis=0).astype(jnp.bfloat16)               # (2*Cout, rows_pt)

        conv, ssum, ssq, scross = _run_phase_gemm(pt, wb, Cout, tnp, nb)
        tot_sum = tot_sum + jnp.sum(ssum, axis=(0, 2))
        tot_sq = tot_sq + jnp.sum(ssq, axis=(0, 2))
        tot_cross = tot_cross + jnp.sum(scross, axis=(0, 2))
        phase_conv.append((a, b, Ho_a, Wo_b, NPph, tnp, nb, conv))

    # ---- hoisted whitening: per-channel scale matrix + mean-folded bias -----
    n = float(NP_total)
    mr, mi = tot_sum[:Cout] / n, tot_sum[Cout:] / n
    vrr = tot_sq[:Cout] / n - mr * mr + EPS
    vii = tot_sq[Cout:] / n - mi * mi + EPS
    vri = tot_cross / n - mr * mi
    tau = vrr + vii
    delta = vrr * vii - vri * vri
    s_ = jnp.sqrt(delta)
    t_ = jnp.sqrt(tau + 2.0 * s_)
    rst = 1.0 / (s_ * t_)
    urr, uii, uri = (s_ + vii) * rst, (s_ + vrr) * rst, -vri * rst
    Wrr, Wri, Wii = params["Wrr"], params["Wri"], params["Wii"]
    Br, Bi = params["Br"], params["Bi"]
    zrr = Wrr * urr + Wri * uri
    zri = Wrr * uri + Wri * uii
    zir = Wri * urr + Wii * uri
    zii = Wri * uri + Wii * uii
    br2 = Br - zrr * mr - zri * mi
    bi2 = Bi - zir * mr - zii * mi
    tab = jnp.stack([jnp.concatenate([zrr, zii]),
                     jnp.concatenate([zri, zir]),
                     jnp.concatenate([br2, bi2])],
                    axis=0)[..., None].astype(jnp.float32)   # (3, 2*Cout, 1)

    # ---- pass 2 (per phase): read-scale-store + CLeakyReLU, scatter back ----
    yr_out = jnp.zeros((N, Cout, Ho, Wo), jnp.float32)
    yi_out = jnp.zeros((N, Cout, Ho, Wo), jnp.float32)
    for (a, b, Ho_a, Wo_b, NPph, tnp, nb, conv) in phase_conv:
        y = _run_phase_bn(tab, conv, Cout, tnp, nb, params["slope"])
        y = y[:, :NPph]
        yr_p = y[:Cout].reshape(Cout, N, Ho_a, Wo_b).transpose(1, 0, 2, 3)
        yi_p = y[Cout:].reshape(Cout, N, Ho_a, Wo_b).transpose(1, 0, 2, 3)
        yr_out = yr_out.at[:, :, a::s, b::s].set(yr_p)
        yi_out = yi_out.at[:, :, a::s, b::s].set(yi_p)
    return yr_out, yi_out


# --------------------------- pure-JAX reference --------------------------------
def decoder_reference(params, xr, xi, skip=None):
    if skip is not None:
        xr = padded_cat(xr, skip[0])
        xi = padded_cat(xi, skip[1])
    w_re, w_im = params["w_re"], params["w_im"]
    K = w_re.shape[2]
    stride, pad = params["stride"], params["pad"]

    def convT(x, w):  # PyTorch ConvTranspose2d (bias=False) semantics
        return lax.conv_general_dilated(
            x, w[:, :, ::-1, ::-1],
            window_strides=(1, 1),
            padding=[(K - 1 - pad, K - 1 - pad)] * 2,
            lhs_dilation=(stride, stride),
            dimension_numbers=("NCHW", "IOHW", "NCHW"),
            precision=lax.Precision.HIGHEST)

    real = convT(xr, w_re) - convT(xi, w_im)
    imag = convT(xi, w_re) + convT(xr, w_im)

    def ch(v):
        return v.reshape(1, -1, 1, 1)

    mr = real.mean(axis=(0, 2, 3), keepdims=True)
    mi = imag.mean(axis=(0, 2, 3), keepdims=True)
    xrc, xic = real - mr, imag - mi
    vrr = (xrc * xrc).mean(axis=(0, 2, 3), keepdims=True) + EPS
    vri = (xrc * xic).mean(axis=(0, 2, 3), keepdims=True)
    vii = (xic * xic).mean(axis=(0, 2, 3), keepdims=True) + EPS
    tau = vrr + vii
    delta = vrr * vii - vri * vri
    s = jnp.sqrt(delta)
    t = jnp.sqrt(tau + 2.0 * s)
    rst = 1.0 / (s * t)
    urr, uii, uri = (s + vii) * rst, (s + vrr) * rst, -vri * rst
    Wrr, Wri, Wii = ch(params["Wrr"]), ch(params["Wri"]), ch(params["Wii"])
    zrr = Wrr * urr + Wri * uri
    zri = Wrr * uri + Wri * uii
    zir = Wri * urr + Wii * uri
    zii = Wri * uri + Wii * uii
    yr = zrr * xrc + zri * xic + ch(params["Br"])
    yi = zir * xrc + zii * xic + ch(params["Bi"])
    slope = params["slope"]
    yr = jnp.where(yr >= 0, yr, slope * yr)
    yi = jnp.where(yi >= 0, yi, slope * yi)
    return yr, yi


# ----------------------------------- demo --------------------------------------
if __name__ == "__main__":
    key = jax.random.PRNGKey(0)
    k1, k2, k3, k4, k5, k6, k7 = jax.random.split(key, 7)

    # dconv_cfg = (in_ch=4, out_ch=4, kernel=3, stride=2, padding=1), slope=0.1
    Cin, Cout, K, stride, pad = 4, 4, 3, 2, 1
    slope = 0.1

    params = dict(
        # deterministic synthetic weights (ConvTranspose2d layout: Cin,Cout,kH,kW)
        w_re=0.1 * jax.random.normal(k1, (Cin, Cout, K, K), jnp.float32),
        w_im=0.1 * jax.random.normal(k2, (Cin, Cout, K, K), jnp.float32),
        # ComplexBatchNorm.reset_parameters(): Wrr=Wii=1, Wri~U(-0.9,0.9), B=0
        Wrr=jnp.ones((Cout,), jnp.float32),
        Wri=jax.random.uniform(k3, (Cout,), jnp.float32, -0.9, 0.9),
        Wii=jnp.ones((Cout,), jnp.float32),
        Br=jnp.zeros((Cout,), jnp.float32),
        Bi=jnp.zeros((Cout,), jnp.float32),
        stride=stride, pad=pad, slope=slope,
    )

    # Inputs (NCHW like PyTorch): x has 2 channels, skip has 2 -> concat = 4.
    xr = jax.random.normal(k4, (2, 2, 15, 16), jnp.float32)
    xi = jax.random.normal(k5, (2, 2, 15, 16), jnp.float32)
    skip = (jax.random.normal(k6, (2, 2, 16, 16), jnp.float32),
            jax.random.normal(k7, (2, 2, 16, 16), jnp.float32))

    # block_np=128 splits each sub-pixel phase into 4 lane blocks, exercising
    # the gridded partial-stat path; use 2048-8192 for production shapes.
    yr, yi = decoder_forward(params, xr, xi, skip=skip, block_np=128)
    jax.block_until_ready((yr, yi))

    yr_ref, yi_ref = decoder_reference(params, xr, xi, skip=skip)
    # Kernel GEMMs use bf16 operands (f32 accumulation) vs. the f32 HIGHEST
    # precision reference conv, so allow bf16-level tolerance.
    np.testing.assert_allclose(np.asarray(yr), np.asarray(yr_ref),
                               rtol=5e-2, atol=5e-2)
    np.testing.assert_allclose(np.asarray(yi), np.asarray(yi_ref),
                               rtol=5e-2, atol=5e-2)

    print("KERNEL_OK")
</pallas_src>

<mosaic_0001>
module attributes {stable_mosaic.version = 11 : i64} {
  func.func @conv_stats_kernel(%arg0: i32, %arg1: memref<8x128xbf16, #tpu.memory_space<vmem>>, %arg2: memref<8x8xbf16, #tpu.memory_space<vmem>>, %arg3: memref<8x128xf32, #tpu.memory_space<vmem>>, %arg4: memref<1x8x128xf32, #tpu.memory_space<vmem>>, %arg5: memref<1x8x128xf32, #tpu.memory_space<vmem>>, %arg6: memref<1x4x128xf32, #tpu.memory_space<vmem>>) attributes {dimension_semantics = [#tpu.dimension_semantics<parallel>], iteration_bounds = array<i64: 4>, scalar_prefetch = 0 : i64, scratch_operands = 0 : i64, tpu.core_type = #tpu.core_type<tc>, window_params = [{transform_indices = @transform_0, window_bounds = array<i64: 8, 128>}, {pipeline_mode = #tpu.pipeline_mode<synchronous>, transform_indices = @transform_1, window_bounds = array<i64: 8, 8>}, {transform_indices = @transform_2, window_bounds = array<i64: 8, 128>}, {transform_indices = @transform_3, window_bounds = array<i64: 1, 8, 128>}, {transform_indices = @transform_4, window_bounds = array<i64: 1, 8, 128>}, {transform_indices = @transform_5, window_bounds = array<i64: 1, 4, 128>}]} {
    %c0 = arith.constant 0 : index
    %c0_0 = arith.constant 0 : index
    %0 = vector.load %arg2[%c0, %c0_0] : memref<8x8xbf16, #tpu.memory_space<vmem>>, vector<8x8xbf16>
    %c0_1 = arith.constant 0 : index
    %c0_2 = arith.constant 0 : index
    %1 = vector.load %arg1[%c0_1, %c0_2] : memref<8x128xbf16, #tpu.memory_space<vmem>>, vector<8x128xbf16>
    %cst = arith.constant dense<0.000000e+00> : vector<8x128xf32>
    %2 = tpu.matmul %0, %1, %cst {dimension_numbers = #tpu.dot_dimension_numbers<[1], [0], [0], [1], [0, 0, 1, 1], [], []>} : vector<8x8xbf16>, vector<8x128xbf16>, vector<8x128xf32> -> vector<8x128xf32>
    %c0_3 = arith.constant 0 : index
    %c0_4 = arith.constant 0 : index
    %3 = vector.load %arg3[%c0_3, %c0_4] : memref<8x128xf32, #tpu.memory_space<vmem>>, vector<8x128xf32>
    tpu.vector_store %arg3[%c0_3, %c0_4], %2 {strides = array<i32>} : memref<8x128xf32, #tpu.memory_space<vmem>>, vector<8x128xf32>,
    %c0_5 = arith.constant 0 : index
    %c0_6 = arith.constant 0 : index
    %c0_7 = arith.constant 0 : index
    %4 = vector.load %arg4[%c0_5, %c0_6, %c0_7] : memref<1x8x128xf32, #tpu.memory_space<vmem>>, vector<1x8x128xf32>
    %5 = vector.shape_cast %4 : vector<1x8x128xf32> to vector<8x128xf32>
    %6 = vector.shape_cast %2 : vector<8x128xf32> to vector<1x8x128xf32>
    tpu.vector_store %arg4[%c0_5, %c0_6, %c0_7], %6 {strides = array<i32>} : memref<1x8x128xf32, #tpu.memory_space<vmem>>, vector<1x8x128xf32>,
    %7 = arith.mulf %2, %2 : vector<8x128xf32>
    %c0_8 = arith.constant 0 : index
    %c0_9 = arith.constant 0 : index
    %c0_10 = arith.constant 0 : index
    %8 = vector.load %arg5[%c0_8, %c0_9, %c0_10] : memref<1x8x128xf32, #tpu.memory_space<vmem>>, vector<1x8x128xf32>
    %9 = vector.shape_cast %8 : vector<1x8x128xf32> to vector<8x128xf32>
    %10 = vector.shape_cast %7 : vector<8x128xf32> to vector<1x8x128xf32>
    tpu.vector_store %arg5[%c0_8, %c0_9, %c0_10], %10 {strides = array<i32>} : memref<1x8x128xf32, #tpu.memory_space<vmem>>, vector<1x8x128xf32>,
    %11 = vector.extract_strided_slice %2 {offsets = [0, 0], sizes = [4, 128], strides = [1, 1]} : vector<8x128xf32> to vector<4x128xf32>
    %12 = vector.extract_strided_slice %2 {offsets = [4, 0], sizes = [4, 128], strides = [1, 1]} : vector<8x128xf32> to vector<4x128xf32>
    %13 = arith.mulf %11, %12 : vector<4x128xf32>
    %c0_11 = arith.constant 0 : index
    %c0_12 = arith.constant 0 : index
    %c0_13 = arith.constant 0 : index
    %14 = vector.load %arg6[%c0_11, %c0_12, %c0_13] : memref<1x4x128xf32, #tpu.memory_space<vmem>>, vector<1x4x128xf32>
    %15 = vector.shape_cast %14 : vector<1x4x128xf32> to vector<4x128xf32>
    %16 = vector.shape_cast %13 : vector<4x128xf32> to vector<1x4x128xf32>
    tpu.vector_store %arg6[%c0_11, %c0_12, %c0_13], %16 {strides = array<i32>} : memref<1x4x128xf32, #tpu.memory_space<vmem>>, vector<1x4x128xf32>,
    return
  }
  func.func @transform_0(%arg0: i32) -> (i32, i32) {
    %c0_i32 = arith.constant 0 : i32
    %c0_i32_0 = arith.constant 0 : i32
    return %c0_i32, %arg0 : i32, i32
  }
  func.func @transform_1(%arg0: i32) -> (i32, i32) {
    %c0_i32 = arith.constant 0 : i32
    %c0_i32_0 = arith.constant 0 : i32
    %c0_i32_1 = arith.constant 0 : i32
    return %c0_i32, %c0_i32_0 : i32, i32
  }
  func.func @transform_2(%arg0: i32) -> (i32, i32) {
    %c0_i32 = arith.constant 0 : i32
    %c0_i32_0 = arith.constant 0 : i32
    return %c0_i32, %arg0 : i32, i32
  }
  func.func @transform_3(%arg0: i32) -> (i32, i32, i32) {
    %c0_i32 = arith.constant 0 : i32
    %c0_i32_0 = arith.constant 0 : i32
    %c0_i32_1 = arith.constant 0 : i32
    return %arg0, %c0_i32, %c0_i32_0 : i32, i32, i32
  }
  func.func @transform_4(%arg0: i32) -> (i32, i32, i32) {
    %c0_i32 = arith.constant 0 : i32
    %c0_i32_0 = arith.constant 0 : i32
    %c0_i32_1 = arith.constant 0 : i32
    return %arg0, %c0_i32, %c0_i32_0 : i32, i32, i32
  }
  func.func @transform_5(%arg0: i32) -> (i32, i32, i32) {
    %c0_i32 = arith.constant 0 : i32
    %c0_i32_0 = arith.constant 0 : i32
    %c0_i32_1 = arith.constant 0 : i32
    return %arg0, %c0_i32, %c0_i32_0 : i32, i32, i32
  }
}

</mosaic_0001>

<llo_original>
// kernel: tpu_custom_call.1
$region0: #{tpu_custom_call.1}
  #allocation0 [shape = 'u32[]', space=smem, size = 0x4, offset = 0x4, fixed_abs, tag = 'smem constant byte address 0x4 - core index']
  #allocation1 [shape = 'u32[144,128]{1,0:T(1,128)}', space=vmem, size = 0x12000, scoped, tag = 'internal scratch']
  %s0 = inlined_call_operand.hbm [shape: bf16[8,512], index: 0, kind: input, shape index: {}]
  %s1 = inlined_call_operand.hbm [shape: bf16[8,8], index: 1, kind: input, shape index: {}]
  %s2 = inlined_call_operand.hbm [shape: f32[8,512], index: 2, kind: output, shape index: {0}]
  %s3 = inlined_call_operand.hbm [shape: f32[4,8,128], index: 3, kind: output, shape index: {1}]
  %s4 = inlined_call_operand.hbm [shape: f32[4,8,128], index: 4, kind: output, shape index: {2}]
  %s5 = inlined_call_operand.hbm [shape: f32[4,4,128], index: 5, kind: output, shape index: {3}]
  %6 = xla_tuple %s2, %s3, %s4, %s5
  %s7 = sld [smem:[#allocation0]]
  $region73: #{tpu_custom_call.1} parent=0
    _
  %s9 = ssub.s32 1, %s7
  %s10 = scalar_select 0, %s9, %s7
  $region1: #{tpu_custom_call.1} parent=0
    #allocation2 [shape = 'u8[4096]{0}', space=vmem, size = 0x1000, scoped, tag = 'input window, operand 0']
    #allocation3 [shape = 's32[2]{0}', space=sflag, size = 0x8, scoped, tag = 'scoped memory for tpu_custom_call.1']
    #allocation4 [shape = 's32[2]{0}', space=sflag, size = 0x8, scoped, tag = 'scoped memory for tpu_custom_call.1']
    #allocation5 [shape = 'u8[2048]{0}', space=vmem, size = 0x800, scoped, tag = 'input window, operand 1, single buffered']
    #allocation6 [shape = 's32[1]{0}', space=sflag, size = 0x4, scoped, tag = 'scoped memory for tpu_custom_call.1']
    #allocation7 [shape = 'u8[8192]{0}', space=vmem, size = 0x2000, scoped, tag = 'output window, operand 0']
    #allocation8 [shape = 'u8[8192]{0}', space=vmem, size = 0x2000, scoped, tag = 'output window, operand 1']
    #allocation9 [shape = 's32[2]{0}', space=sflag, size = 0x8, scoped, tag = 'scoped memory for tpu_custom_call.1']
    #allocation10 [shape = 'u8[8192]{0}', space=vmem, size = 0x2000, scoped, tag = 'output window, operand 2']
    #allocation11 [shape = 'u8[4096]{0}', space=vmem, size = 0x1000, scoped, tag = 'output window, operand 3']
    #allocation12 [shape = 's32[2]{0}', space=sflag, size = 0x8, scoped, tag = 'scoped memory for tpu_custom_call.1']
    %11 = vsyncpa [#allocation3], 0
    %s12 = scalar_lea.sflag [#allocation3], 1
    %13 = vsyncpa %s12, 0
    %14 = vsyncpa [#allocation6], 0
    %15 = vsyncpa [#allocation4], 0
    %s16 = scalar_lea.sflag [#allocation4], 1
    %17 = vsyncpa %s16, 0
    %18 = vsyncpa [#allocation9], 0
    %s19 = scalar_lea.sflag [#allocation9], 1
    %20 = vsyncpa %s19, 0
    %21 = vsyncpa [#allocation12], 0
    %s22 = scalar_lea.sflag [#allocation12], 1
    %23 = vsyncpa %s22, 0
    loop: start=0, step=1, limit=6
    $region2: #{tpu_custom_call.1} parent=1 // loop_pre_header
      _
    $region3: #{tpu_custom_call.1} parent=1 // loop_header
      %s25 = sphi 0, %s29
      %p26 = scmp.ge.s32.totalorder %s25, 6
      %s35 = sphi 0, %s37
      %s38 = sphi 0, %s35
      %s39 = sphi 0, %s38
      %s55 = sphi 0, %s39
      %s59 = sphi 0, %s59
      %s61 = sphi 0, %s59
      %s62 = sphi 0, %s61
      %s76 = sphi 0, %s62
      %s82 = sphi 0, %s84
      %s85 = sphi 0, %s82
      %s86 = sphi 0, %s85
      %s102 = sphi 0, %s86
      %s108 = sphi 0, %s110
      %s111 = sphi 0, %s108
      %s112 = sphi 0, %s111
      %s128 = sphi 0, %s112
      %s134 = sphi 0, %s136
      %s137 = sphi 0, %s134
      %s138 = sphi 0, %s137
      %s154 = sphi 0, %s138
      %s160 = sphi 0, %s162
      %s163 = sphi 0, %s160
      %s164 = sphi 0, %s163
      %s180 = sphi 0, %s164
    $region4: #{tpu_custom_call.1} parent=1 // loop_header_branch
      %28 = sbr.rel (%p26) target = $region8
    $region5: #{tpu_custom_call.1} parent=1 // loop_body
      %s30 = ssub.s32 %s25, 1
      %s31 = ssub.s32 %s25, 2
      %s32 = sadd.s32 %s25, 1
      %s33 = ssub.s32 %s25, %s32
      %p34 = scmp.eq.s32.totalorder %s33, 0
      %s36 = sadd.s32 %s35, 1
      %s37 = scalar_select %p34, %s35, %s36
      %p40 = pneg %p34
      %p41 = scmp.eq.s32.totalorder %s25, 3
      %p42 = por %p40, %p41
      %p43 = scmp.ne.s32.totalorder %s35, %s38
      %p44 = scmp.eq.s32.totalorder %s25, 0
      %p45 = por %p43, %p44
      %p46 = scmp.ne.s32.totalorder %s35, %s38
      %p47 = scmp.eq.s32.totalorder %s30, 3
      %p48 = por %p46, %p47
      %p49 = scmp.ne.s32.totalorder %s38, %s39
      %p50 = scmp.eq.s32.totalorder %s30, 0
      %p51 = por %p49, %p50
      %p52 = scmp.ne.s32.totalorder %s38, %s39
      %p53 = scmp.eq.s32.totalorder %s31, 3
      %p54 = por %p52, %p53
      %p56 = scmp.ne.s32.totalorder %s39, %s55
      %p57 = scmp.eq.s32.totalorder %s31, 0
      %p58 = por %p56, %p57
      %s60 = sadd.s32 %s59, 1
      %p63 = scmp.eq.s32.totalorder %s25, 3
      %p64 = scmp.ne.s32.totalorder %s59, %s61
      %p65 = scmp.eq.s32.totalorder %s25, 0
      %p66 = por %p64, %p65
      %p67 = scmp.ne.s32.totalorder %s59, %s61
      %p68 = scmp.eq.s32.totalorder %s30, 3
      %p69 = por %p67, %p68
      %p70 = scmp.ne.s32.totalorder %s61, %s62
      %p71 = scmp.eq.s32.totalorder %s30, 0
      %p72 = por %p70, %p71
      %p73 = scmp.ne.s32.totalorder %s61, %s62
      %p74 = scmp.eq.s32.totalorder %s31, 3
      %p75 = por %p73, %p74
      %p77 = scmp.ne.s32.totalorder %s62, %s76
      %p78 = scmp.eq.s32.totalorder %s31, 0
      %p79 = por %p77, %p78
      %s80 = ssub.s32 %s25, %s32
      %p81 = scmp.eq.s32.totalorder %s80, 0
      %s83 = sadd.s32 %s82, 1
      %s84 = scalar_select %p81, %s82, %s83
      %p87 = pneg %p81
      %p88 = scmp.eq.s32.totalorder %s25, 3
      %p89 = por %p87, %p88
      %p90 = scmp.ne.s32.totalorder %s82, %s85
      %p91 = scmp.eq.s32.totalorder %s25, 0
      %p92 = por %p90, %p91
      %p93 = scmp.ne.s32.totalorder %s82, %s85
      %p94 = scmp.eq.s32.totalorder %s30, 3
      %p95 = por %p93, %p94
      %p96 = scmp.ne.s32.totalorder %s85, %s86
      %p97 = scmp.eq.s32.totalorder %s30, 0
      %p98 = por %p96, %p97
      %p99 = scmp.ne.s32.totalorder %s85, %s86
      %p100 = scmp.eq.s32.totalorder %s31, 3
      %p101 = por %p99, %p100
      %p103 = scmp.ne.s32.totalorder %s86, %s102
      %p104 = scmp.eq.s32.totalorder %s31, 0
      %p105 = por %p103, %p104
      %s106 = ssub.s32 %s25, %s32
      %p107 = scmp.eq.s32.totalorder %s106, 0
      %s109 = sadd.s32 %s108, 1
      %s110 = scalar_select %p107, %s108, %s109
      %p113 = pneg %p107
      %p114 = scmp.eq.s32.totalorder %s25, 3
      %p115 = por %p113, %p114
      %p116 = scmp.ne.s32.totalorder %s108, %s111
      %p117 = scmp.eq.s32.totalorder %s25, 0
      %p118 = por %p116, %p117
      %p119 = scmp.ne.s32.totalorder %s108, %s111
      %p120 = scmp.eq.s32.totalorder %s30, 3
      %p121 = por %p119, %p120
      %p122 = scmp.ne.s32.totalorder %s111, %s112
      %p123 = scmp.eq.s32.totalorder %s30, 0
      %p124 = por %p122, %p123
      %p125 = scmp.ne.s32.totalorder %s111, %s112
      %p126 = scmp.eq.s32.totalorder %s31, 3
      %p127 = por %p125, %p126
      %p129 = scmp.ne.s32.totalorder %s112, %s128
      %p130 = scmp.eq.s32.totalorder %s31, 0
      %p131 = por %p129, %p130
      %s132 = ssub.s32 %s25, %s32
      %p133 = scmp.eq.s32.totalorder %s132, 0
      %s135 = sadd.s32 %s134, 1
      %s136 = scalar_select %p133, %s134, %s135
      %p139 = pneg %p133
      %p140 = scmp.eq.s32.totalorder %s25, 3
      %p141 = por %p139, %p140
      %p142 = scmp.ne.s32.totalorder %s134, %s137
      %p143 = scmp.eq.s32.totalorder %s25, 0
      %p144 = por %p142, %p143
      %p145 = scmp.ne.s32.totalorder %s134, %s137
      %p146 = scmp.eq.s32.totalorder %s30, 3
      %p147 = por %p145, %p146
      %p148 = scmp.ne.s32.totalorder %s137, %s138
      %p149 = scmp.eq.s32.totalorder %s30, 0
      %p150 = por %p148, %p149
      %p151 = scmp.ne.s32.totalorder %s137, %s138
      %p152 = scmp.eq.s32.totalorder %s31, 3
      %p153 = por %p151, %p152
      %p155 = scmp.ne.s32.totalorder %s138, %s154
      %p156 = scmp.eq.s32.totalorder %s31, 0
      %p157 = por %p155, %p156
      %s158 = ssub.s32 %s25, %s32
      %p159 = scmp.eq.s32.totalorder %s158, 0
      %s161 = sadd.s32 %s160, 1
      %s162 = scalar_select %p159, %s160, %s161
      %p165 = pneg %p159
      %p166 = scmp.eq.s32.totalorder %s25, 3
      %p167 = por %p165, %p166
      %p168 = scmp.ne.s32.totalorder %s160, %s163
      %p169 = scmp.eq.s32.totalorder %s25, 0
      %p170 = por %p168, %p169
      %p171 = scmp.ne.s32.totalorder %s160, %s163
      %p172 = scmp.eq.s32.totalorder %s30, 3
      %p173 = por %p171, %p172
      %p174 = scmp.ne.s32.totalorder %s163, %s164
      %p175 = scmp.eq.s32.totalorder %s30, 0
      %p176 = por %p174, %p175
      %p177 = scmp.ne.s32.totalorder %s163, %s164
      %p178 = scmp.eq.s32.totalorder %s31, 3
      %p179 = por %p177, %p178
      %p181 = scmp.ne.s32.totalorder %s164, %s180
      %p182 = scmp.eq.s32.totalorder %s31, 0
      %p183 = por %p181, %p182
      %p184 = scmp.le.s32.totalorder 1, %s25
      %p185 = scmp.lt.s32.totalorder %s25, 5
      %p186 = pnand %p184, %p185
      %p187 = pneg %p186
      // Predicated region
      $region9: #{tpu_custom_call.1} parent=5 // pred_check
        _
      $region10: #{tpu_custom_call.1} parent=5 // pred_check_branch
        %189 = sbr.rel (%p186) target = $region12
      $region11: #{tpu_custom_call.1} parent=5 // pred_region
        %s190 = ssub.s32 %s25, 1
        // Predicated region
        $region13: #{tpu_custom_call.1} parent=11 // pred_check
          %p191 = pneg %p72
        $region14: #{tpu_custom_call.1} parent=11 // pred_check_branch
          %193 = sbr.rel (%p191) target = $region16
        $region15: #{tpu_custom_call.1} parent=11 // pred_region
          %s195 = ssub.s32 64, 64
          %196 = vsyncadd [#allocation6], %s195
          %s198 = sshll.u32 [#allocation5], 4
          %s199 = int_to_ptr.vmem [resolvable:$true] %s198
          %201 = dma.hbm_to_vmem [thread:$0]  %s1, 64, %s199, [#allocation6]
        $region16: #{tpu_custom_call.1} parent=11 // pred_fallthru
          _
      $region12: #{tpu_custom_call.1} parent=5 // pred_fallthru
        _
      %p202 = scmp.lt.s32.totalorder %s25, 4
      // Predicated region
      $region17: #{tpu_custom_call.1} parent=5 // pred_check
        %p203 = pneg %p202
      $region18: #{tpu_custom_call.1} parent=5 // pred_check_branch
        %205 = sbr.rel (%p203) target = $region20
      $region19: #{tpu_custom_call.1} parent=5 // pred_region
        // Predicated region
        $region21: #{tpu_custom_call.1} parent=19 // pred_check
          %p206 = pneg %p45
        $region22: #{tpu_custom_call.1} parent=19 // pred_check_branch
          %208 = sbr.rel (%p206) target = $region24
        $region23: #{tpu_custom_call.1} parent=19 // pred_region
          %s209 = sand.u32 %s35, 1
          %s210 = scalar_lea.sflag [#allocation3], %s209
          %s211 = sand.u32 %s35, 1
          %s212 = smul.addr %s211, 4
          %s213 = scalar_lea.vmem [#allocation2], %s212
          %s215 = ssub.s32 64, 64
          %216 = vsyncadd %s210, %s215
          %s217 = smul.addr %s25, 64
          %s218 = scalar_lea.hbm %s0, %s217
          %s220 = sshll.u32 %s213, 4
          %s221 = int_to_ptr.vmem [resolvable:$true] %s220
          %223 = dma.hbm_to_vmem [thread:$0]  %s218, 64, %s221, %s210
        $region24: #{tpu_custom_call.1} parent=19 // pred_fallthru
          _
      $region20: #{tpu_custom_call.1} parent=5 // pred_fallthru
        _
      %p224 = scmp.le.s32.totalorder 1, %s25
      %p225 = scmp.lt.s32.totalorder %s25, 5
      %p226 = pnand %p224, %p225
      %p227 = pneg %p226
      // Predicated region
      $region25: #{tpu_custom_call.1} parent=5 // pred_check
        _
      $region26: #{tpu_custom_call.1} parent=5 // pred_check_branch
        %229 = sbr.rel (%p226) target = $region28
      $region27: #{tpu_custom_call.1} parent=5 // pred_region
        %s230 = ssub.s32 %s25, 1
        %s231 = sand.u32 %s38, 1
        %s232 = scalar_lea.sflag [#allocation3], %s231
        %s233 = sand.u32 %s38, 1
        %s234 = smul.addr %s233, 4
        %s235 = scalar_lea.vmem [#allocation2], %s234
        // Predicated region
        $region29: #{tpu_custom_call.1} parent=27 // pred_check
          %p236 = pneg %p51
        $region30: #{tpu_custom_call.1} parent=27 // pred_check_branch
          %238 = sbr.rel (%p236) target = $region32
        $region31: #{tpu_custom_call.1} parent=27 // pred_region
          %239 = dma.done %s232, 64
        $region32: #{tpu_custom_call.1} parent=27 // pred_fallthru
          _
        // Predicated region
        $region33: #{tpu_custom_call.1} parent=27 // pred_check
          %p240 = pneg %p72
        $region34: #{tpu_custom_call.1} parent=27 // pred_check_branch
          %242 = sbr.rel (%p240) target = $region36
        $region35: #{tpu_custom_call.1} parent=27 // pred_region
          %243 = dma.done [#allocation6], 64
        $region36: #{tpu_custom_call.1} parent=27 // pred_fallthru
          _
        %s244 = sand.u32 %s38, 1
        %s245 = scalar_lea.sflag [#allocation3], %s244
        %s246 = sand.u32 %s38, 1
        %s247 = smul.addr %s246, 4
        %s248 = scalar_lea.vmem [#allocation2], %s247
        %p249 = pneg %p51
        %p250 = pneg %p48
        %p251 = pneg %p72
        %p252 = pneg %p69
        %p253 = pneg %p98
        %p254 = pneg %p95
        %s255 = sand.u32 %s85, 1
        %s256 = scalar_lea.sflag [#allocation4], %s255
        %s257 = sand.u32 %s85, 1
        %s258 = smul.addr %s257, 8
        %s259 = scalar_lea.vmem [#allocation7], %s258
        %p260 = pneg %p124
        %p261 = pneg %p121
        %s262 = sand.u32 %s30, 1
        %s263 = scalar_lea.sflag [#allocation9], %s262
        %s264 = sand.u32 %s111, 1
        %s265 = smul.addr %s264, 8
        %s266 = scalar_lea.vmem [#allocation8], %s265
        %p267 = pneg %p150
        %p268 = pneg %p147
        %s269 = sand.u32 %s30, 1
        %s270 = scalar_lea.sflag [#allocation9], %s269
        %s271 = sand.u32 %s137, 1
        %s272 = smul.addr %s271, 8
        %s273 = scalar_lea.vmem [#allocation10], %s272
        %p274 = pneg %p176
        %p275 = pneg %p173
        %s276 = sand.u32 %s163, 1
        %s277 = scalar_lea.sflag [#allocation12], %s276
        %s278 = sand.u32 %s163, 1
        %s279 = smul.addr %s278, 4
        %s280 = scalar_lea.vmem [#allocation11], %s279
        %v282 = vld [vmem:[#allocation5] sm:$0xf]
        %v283 = vld [vmem:[%s235] sm:$0xf]
        %vm284 = vcmask 64512
        %v286 = vsel %vm284, %v282, 0
        %vm288 = vcmask 1043456
        %v290 = vsel %vm288, %v283, 0
        %292 = vmatprep.subr.bf16.mxu0 0
        %293 = vmatpush1.bf16.msra.mxu0 0
        %294 = vmatprep.subr.bf16.mxu0 0
        %295 = vmatpush1.bf16.msra.mxu0 0
        %296 = vmatprep.subr.bf16.mxu0 0
        %297 = vmatpush1.bf16.msra.mxu0 0
        %298 = vmatprep.subr.bf16.mxu0 0
        %299 = vmatpush1.bf16.msra.mxu0 0
        %300 = vmatprep.subr.bf16.mxu0 0
        %301 = vmatpush1.bf16.msra.mxu0 0
        %302 = vmatprep.subr.bf16.mxu0 0
        %303 = vmatpush1.bf16.msra.mxu0 0
        %304 = vmatprep.subr.bf16.mxu0 0
        %305 = vmatpush1.bf16.msra.mxu0 0
        %306 = vmatprep.subr.bf16.mxu0 0
        %307 = vmatpush1.bf16.msra.mxu0 %v290
        %308 = vmatprep.subr.bf16.mxu0 0
        %309 = vmatpush2.bf16.msra.mxu0 0
        %310 = vmatprep.subr.bf16.mxu0 0
        %311 = vmatpush2.bf16.msra.mxu0 0
        %312 = vmatprep.subr.bf16.mxu0 0
        %313 = vmatpush2.bf16.msra.mxu0 0
        %314 = vmatprep.subr.bf16.mxu0 0
        %315 = vmatpush2.bf16.msra.mxu0 0
        %316 = vmatprep.subr.bf16.mxu0 0
        %317 = vmatpush2.bf16.msra.mxu0 0
        %318 = vmatprep.subr.bf16.mxu0 0
        %319 = vmatpush2.bf16.msra.mxu0 0
        %320 = vmatprep.subr.bf16.mxu0 0
        %321 = vmatpush2.bf16.msra.mxu0 0
        %322 = vmatprep.subr.bf16.mxu0 0
        %323 = vmatpush2.bf16.msra.mxu0 0
        %324 = vmatprep.mubr.bf16.mxu0 0
        %325 = vmatmul.mubr.bf16.gmra.mxu0 %v286
        %v326 = vpop.f32.mrf.mxu0
        %v327 = vadd.f32 0.0, %v326
        %v328 = vpop.f32.mrf.mxu0
        %v329 = vpop.f32.mrf.mxu0
        %v330 = vpop.f32.mrf.mxu0
        %331 = vdwg.mxu0
        %332 = vst [vmem:[%s259] sm:$0xff] %v327
        %333 = vst [vmem:[%s266] sm:$0xff] %v327
        %v334 = vmul.f32 %v327, %v327
        %335 = vst [vmem:[%s273] sm:$0xff] %v334
        %v337 = vrot.slane %v327, 4
        %v339 = vmul.f32 %v327, %v337
        %340 = vst [vmem:[%s280] sm:$0xf] %v339
        %s341 = sand.u32 %s85, 1
        %s342 = scalar_lea.sflag [#allocation4], %s341
        %s343 = sand.u32 %s85, 1
        %s344 = smul.addr %s343, 8
        %s345 = scalar_lea.vmem [#allocation7], %s344
        %s346 = sand.u32 %s30, 1
        %s347 = scalar_lea.sflag [#allocation9], %s346
        %s348 = sand.u32 %s111, 1
        %s349 = smul.addr %s348, 8
        %s350 = scalar_lea.vmem [#allocation8], %s349
        %s351 = sand.u32 %s30, 1
        %s352 = scalar_lea.sflag [#allocation9], %s351
        %s353 = sand.u32 %s137, 1
        %s354 = smul.addr %s353, 8
        %s355 = scalar_lea.vmem [#allocation10], %s354
        %s356 = sand.u32 %s163, 1
        %s357 = scalar_lea.sflag [#allocation12], %s356
        %s358 = sand.u32 %s163, 1
        %s359 = smul.addr %s358, 4
        %s360 = scalar_lea.vmem [#allocation11], %s359
        // Predicated region
        $region37: #{tpu_custom_call.1} parent=27 // pred_check
          %p361 = pneg %p95
        $region38: #{tpu_custom_call.1} parent=27 // pred_check_branch
          %363 = sbr.rel (%p361) target = $region40
        $region39: #{tpu_custom_call.1} parent=27 // pred_region
          %s365 = ssub.s32 128, 128
          %366 = vsyncadd %s342, %s365
          %s367 = smul.addr %s30, 128
          %s368 = scalar_lea.hbm %s2, %s367
          %s370 = sshll.u32 %s345, 4
          %s371 = int_to_ptr.vmem [resolvable:$true] %s370
          %373 = dma.vmem_to_hbm [thread:$0]  %s371, 128, %s368, %s342
        $region40: #{tpu_custom_call.1} parent=27 // pred_fallthru
          _
        // Predicated region
        $region41: #{tpu_custom_call.1} parent=27 // pred_check
          %p374 = pneg %p121
        $region42: #{tpu_custom_call.1} parent=27 // pred_check_branch
          %376 = sbr.rel (%p374) target = $region44
        $region43: #{tpu_custom_call.1} parent=27 // pred_region
          %s378 = ssub.s32 128, 128
          %379 = vsyncadd %s347, %s378
          %s380 = smul.addr %s30, 128
          %s381 = scalar_lea.hbm %s3, %s380
          %s383 = sshll.u32 %s350, 4
          %s384 = int_to_ptr.vmem [resolvable:$true] %s383
          %386 = dma.vmem_to_hbm [thread:$0]  %s384, 128, %s381, %s347
        $region44: #{tpu_custom_call.1} parent=27 // pred_fallthru
          _
        // Predicated region
        $region45: #{tpu_custom_call.1} parent=27 // pred_check
          %p387 = pneg %p147
        $region46: #{tpu_custom_call.1} parent=27 // pred_check_branch
          %389 = sbr.rel (%p387) target = $region48
        $region47: #{tpu_custom_call.1} parent=27 // pred_region
          %s391 = ssub.s32 128, 128
          %392 = vsyncadd %s352, %s391
          %s393 = smul.addr %s30, 128
          %s394 = scalar_lea.hbm %s4, %s393
          %s396 = sshll.u32 %s355, 4
          %s397 = int_to_ptr.vmem [resolvable:$true] %s396
          %399 = dma.vmem_to_hbm [thread:$0]  %s397, 128, %s394, %s352
        $region48: #{tpu_custom_call.1} parent=27 // pred_fallthru
          _
        // Predicated region
        $region49: #{tpu_custom_call.1} parent=27 // pred_check
          %p400 = pneg %p173
        $region50: #{tpu_custom_call.1} parent=27 // pred_check_branch
          %402 = sbr.rel (%p400) target = $region52
        $region51: #{tpu_custom_call.1} parent=27 // pred_region
          %s404 = ssub.s32 64, 64
          %405 = vsyncadd %s357, %s404
          %s406 = smul.addr %s30, 64
          %s407 = scalar_lea.hbm %s5, %s406
          %s409 = sshll.u32 %s360, 4
          %s410 = int_to_ptr.vmem [resolvable:$true] %s409
          %412 = dma.vmem_to_hbm [thread:$0]  %s410, 64, %s407, %s357
        $region52: #{tpu_custom_call.1} parent=27 // pred_fallthru
          _
      $region28: #{tpu_custom_call.1} parent=5 // pred_fallthru
        _
      %p413 = scmp.le.s32.totalorder 2, %s25
      // Predicated region
      $region53: #{tpu_custom_call.1} parent=5 // pred_check
        %p414 = pneg %p413
      $region54: #{tpu_custom_call.1} parent=5 // pred_check_branch
        %416 = sbr.rel (%p414) target = $region56
      $region55: #{tpu_custom_call.1} parent=5 // pred_region
        %s417 = ssub.s32 %s25, 2
        // Predicated region
        $region57: #{tpu_custom_call.1} parent=55 // pred_check
          %p418 = pneg %p101
        $region58: #{tpu_custom_call.1} parent=55 // pred_check_branch
          %420 = sbr.rel (%p418) target = $region60
        $region59: #{tpu_custom_call.1} parent=55 // pred_region
          %s421 = sand.u32 %s86, 1
          %s422 = scalar_lea.sflag [#allocation4], %s421
          %s423 = sand.u32 %s86, 1
          %s424 = smul.addr %s423, 8
          %s425 = scalar_lea.vmem [#allocation7], %s424
          %426 = dma.done %s422, 128
        $region60: #{tpu_custom_call.1} parent=55 // pred_fallthru
          _
        // Predicated region
        $region61: #{tpu_custom_call.1} parent=55 // pred_check
          %p427 = pneg %p127
        $region62: #{tpu_custom_call.1} parent=55 // pred_check_branch
          %429 = sbr.rel (%p427) target = $region64
        $region63: #{tpu_custom_call.1} parent=55 // pred_region
          %s430 = sand.u32 %s31, 1
          %s431 = scalar_lea.sflag [#allocation9], %s430
          %s432 = sand.u32 %s112, 1
          %s433 = smul.addr %s432, 8
          %s434 = scalar_lea.vmem [#allocation8], %s433
          %435 = dma.done %s431, 128
        $region64: #{tpu_custom_call.1} parent=55 // pred_fallthru
          _
        // Predicated region
        $region65: #{tpu_custom_call.1} parent=55 // pred_check
          %p436 = pneg %p153
        $region66: #{tpu_custom_call.1} parent=55 // pred_check_branch
          %438 = sbr.rel (%p436) target = $region68
        $region67: #{tpu_custom_call.1} parent=55 // pred_region
          %s439 = sand.u32 %s31, 1
          %s440 = scalar_lea.sflag [#allocation9], %s439
          %s441 = sand.u32 %s138, 1
          %s442 = smul.addr %s441, 8
          %s443 = scalar_lea.vmem [#allocation10], %s442
          %444 = dma.done %s440, 128
        $region68: #{tpu_custom_call.1} parent=55 // pred_fallthru
          _
        // Predicated region
        $region69: #{tpu_custom_call.1} parent=55 // pred_check
          %p445 = pneg %p179
        $region70: #{tpu_custom_call.1} parent=55 // pred_check_branch
          %447 = sbr.rel (%p445) target = $region72
        $region71: #{tpu_custom_call.1} parent=55 // pred_region
          %s448 = sand.u32 %s164, 1
          %s449 = scalar_lea.sflag [#allocation12], %s448
          %s450 = sand.u32 %s164, 1
          %s451 = smul.addr %s450, 4
          %s452 = scalar_lea.vmem [#allocation11], %s451
          %453 = dma.done %s449, 64
        $region72: #{tpu_custom_call.1} parent=55 // pred_fallthru
          _
      $region56: #{tpu_custom_call.1} parent=5 // pred_fallthru
        _
    $region6: #{tpu_custom_call.1} parent=1 // loop_footer
      %s29 = sadd.s32 1, %s25
    $region7: #{tpu_custom_call.1} parent=1 // loop_footer_branch
      %24 = sbr.rel target = $region3
    $region8: #{tpu_custom_call.1} parent=1 // loop_exit
      _
    %454 = vsyncpa [#allocation3], 1
    %s455 = scalar_lea.sflag [#allocation3], 1
    %456 = vsyncpa %s455, 1
    %457 = vsyncpa [#allocation6], 1
    %458 = vsyncpa [#allocation4], 1
    %s459 = scalar_lea.sflag [#allocation4], 1
    %460 = vsyncpa %s459, 1
    %461 = vsyncpa [#allocation9], 1
    %s462 = scalar_lea.sflag [#allocation9], 1
    %463 = vsyncpa %s462, 1
    %464 = vsyncpa [#allocation12], 1
    %s465 = scalar_lea.sflag [#allocation12], 1
    %466 = vsyncpa %s465, 1

</llo_original>
